<compile_context>
chip_gen: v7x
topology: tpu7x:2x2x1
jax: 0.10.0
libtpu: 0.0.40
codegen_flags: <defaults>
</compile_context>

<pallas_src>
import functools

import jax
import jax.numpy as jnp
from jax.experimental import pallas as pl
from jax.experimental.pallas import tpu as pltpu

BN_EPS = 1e-6


def _fcuup_kernel(x_ref, w_ref, b_ref, o_ref, *, H, W, up):
    # x_ref: (1, 1+N, Cin) one batch element's tokens (CLS included)
    # w_ref: (Cin, Cout)   BN-folded 1x1-conv weight
    # b_ref: (1, Cout)     BN-folded bias
    # o_ref: (1, H*up, W*up, Cout) channels-last, already upsampled
    N = H * W
    x_tok = x_ref[0, pl.ds(1, N), :]                 # drop CLS in-kernel (sublane offset 1)
    w = w_ref[...]
    z = jnp.dot(x_tok, w, preferred_element_type=jnp.float32)   # MXU, (N, Cout)
    z = z + b_ref[...]                               # folded conv-bias + BN shift
    z = jnp.maximum(z, 0.0)                          # ReLU (f32 epilogue)

    cout = z.shape[-1]
    # Fused nearest-neighbor upsample (integer scale), channels-last so Cout
    # stays in lanes.  Both repeats are in-VMEM shuffles, not HBM traffic.
    zw = jnp.repeat(z, up, axis=0)                   # W-direction: (N*up, Cout)
    zw = zw.reshape(H, W * up, cout)                 # (H, W*up, Cout)
    zh = jnp.repeat(zw, up, axis=0)                  # H-direction: (H*up, W*up, Cout)
    o_ref[0] = zh.astype(o_ref.dtype)


def fcuup_forward(x, params, H, W, up_stride):
    """x: (B, 1+H*W, Cin).  Returns (B, Cout, H*up_stride, W*up_stride)."""
    B, N1, Cin = x.shape
    assert N1 == 1 + H * W
    Hu, Wu = H * up_stride, W * up_stride

    w = params["conv_w"]        # (Cin, Cout)  (Conv2d 1x1 weight, transposed)
    bias = params["conv_b"]     # (1, Cout)
    gamma = params["bn_gamma"]  # (1, Cout)
    beta = params["bn_beta"]    # (1, Cout)
    mean = params["bn_mean"]    # (1, Cout)
    var = params["bn_var"]      # (1, Cout)
    Cout = w.shape[1]

    # Fold eval-mode BN (+ conv bias) into an effective weight / bias:
    #   y = ((x@w + b) - mean) * gamma * rsqrt(var+eps) + beta
    #     =  x @ (w*s) + ((b - mean)*s + beta),   s = gamma * rsqrt(var+eps)
    scale = gamma * jax.lax.rsqrt(var + BN_EPS)            # (1, Cout)
    w_eff = (w * scale).astype(x.dtype)                    # matmul operand dtype = x dtype
    b_eff = ((bias - mean) * scale + beta).astype(jnp.float32)

    kernel = functools.partial(_fcuup_kernel, H=H, W=W, up=up_stride)

    y_nhwc = pl.pallas_call(
        kernel,
        out_shape=jax.ShapeDtypeStruct((B, Hu, Wu, Cout), x.dtype),
        grid_spec=pltpu.PrefetchScalarGridSpec(
            num_scalar_prefetch=0,
            grid=(B,),
            in_specs=[
                pl.BlockSpec((1, N1, Cin), lambda bi: (bi, 0, 0)),   # full token block (CLS incl.)
                pl.BlockSpec((Cin, Cout), lambda bi: (0, 0)),        # weight stays VMEM-resident
                pl.BlockSpec((1, Cout), lambda bi: (0, 0)),
            ],
            out_specs=pl.BlockSpec((1, Hu, Wu, Cout), lambda bi: (bi, 0, 0, 0)),
        ),
        compiler_params=pltpu.CompilerParams(
            dimension_semantics=("parallel",),   # megacore / v7x dual-TC sharding over batch
        ),
    )(x, w_eff, b_eff)

    # PyTorch FCUUp returns NCHW; this single transpose is the only remaining
    # layout glue (drop it entirely if the downstream consumer takes NHWC).
    return jnp.transpose(y_nhwc, (0, 3, 1, 2))


def _reference(x, params, H, W, up_stride):
    # Pure-JAX reference of the unfolded math (matmul + bias + BN(eval) + ReLU
    # + nearest upsample), for a semantics check.
    x_tok = x[:, 1:, :]
    z = jnp.einsum("bnc,cd->bnd", x_tok, params["conv_w"],
                   precision=jax.lax.Precision.HIGHEST) + params["conv_b"]
    inv_std = 1.0 / jnp.sqrt(params["bn_var"] + BN_EPS)
    z = (z - params["bn_mean"]) * params["bn_gamma"] * inv_std + params["bn_beta"]
    z = jnp.maximum(z, 0.0)
    B, N, Cout = z.shape
    y = z.reshape(B, H, W, Cout).transpose(0, 3, 1, 2)
    return jnp.repeat(jnp.repeat(y, up_stride, axis=2), up_stride, axis=3)


if __name__ == "__main__":
    # Small, module-consistent shapes.
    B, H, W = 2, 8, 8
    inplanes, outplanes = 32, 16
    up_stride = 2

    key = jax.random.PRNGKey(0)
    kx, kw, kb, kg, kbeta, km, kv = jax.random.split(key, 7)

    x = jax.random.normal(kx, (B, 1 + H * W, inplanes), dtype=jnp.float32)

    # Deterministic synthetic parameters (Conv2d 1x1 weight (Cout,Cin,1,1) stored
    # transposed as (Cin,Cout); BatchNorm2d eval-mode running stats).
    params = {
        "conv_w": 0.1 * jax.random.normal(kw, (inplanes, outplanes), jnp.float32),
        "conv_b": 0.05 * jax.random.normal(kb, (1, outplanes), jnp.float32),
        "bn_gamma": 1.0 + 0.1 * jax.random.normal(kg, (1, outplanes), jnp.float32),
        "bn_beta": 0.1 * jax.random.normal(kbeta, (1, outplanes), jnp.float32),
        "bn_mean": 0.1 * jax.random.normal(km, (1, outplanes), jnp.float32),
        "bn_var": jnp.abs(1.0 + 0.1 * jax.random.normal(kv, (1, outplanes), jnp.float32)),
    }

    out = fcuup_forward(x, params, H, W, up_stride)
    out = jax.block_until_ready(out)

    ref = _reference(x, params, H, W, up_stride)
    assert out.shape == (B, outplanes, H * up_stride, W * up_stride), out.shape
    # BN folding + MXU accumulation order differ slightly from the unfolded f32
    # reference; 2e-4 is ample for f32 (loosen to ~2e-2 if running with bf16 x).
    assert jnp.allclose(out, ref, atol=2e-4, rtol=2e-4), "mismatch vs reference"

    print("KERNEL_OK")
</pallas_src>

<mosaic_0001>
module attributes {stable_mosaic.version = 11 : i64} {
  func.func @_fcuup_kernel(%arg0: i32, %arg1: memref<1x65x32xf32, #tpu.memory_space<vmem>>, %arg2: memref<32x16xf32, #tpu.memory_space<vmem>>, %arg3: memref<1x16xf32, #tpu.memory_space<vmem>>, %arg4: memref<1x16x16x16xf32, #tpu.memory_space<vmem>>) attributes {dimension_semantics = [#tpu.dimension_semantics<parallel>], iteration_bounds = array<i64: 2>, scalar_prefetch = 0 : i64, scratch_operands = 0 : i64, tpu.core_type = #tpu.core_type<tc>, window_params = [{transform_indices = @transform_0, window_bounds = array<i64: 1, 65, 32>}, {pipeline_mode = #tpu.pipeline_mode<synchronous>, transform_indices = @transform_1, window_bounds = array<i64: 32, 16>}, {pipeline_mode = #tpu.pipeline_mode<synchronous>, transform_indices = @transform_2, window_bounds = array<i64: 1, 16>}, {transform_indices = @transform_3, window_bounds = array<i64: 1, 16, 16, 16>}]} {
    %c0 = arith.constant 0 : index
    %c1 = arith.constant 1 : index
    %c0_0 = arith.constant 0 : index
    %0 = vector.load %arg1[%c0, %c1, %c0_0] : memref<1x65x32xf32, #tpu.memory_space<vmem>>, vector<1x64x32xf32>
    %1 = vector.shape_cast %0 : vector<1x64x32xf32> to vector<64x32xf32>
    %c0_1 = arith.constant 0 : index
    %c0_2 = arith.constant 0 : index
    %2 = vector.load %arg2[%c0_1, %c0_2] : memref<32x16xf32, #tpu.memory_space<vmem>>, vector<32x16xf32>
    %cst = arith.constant dense<0.000000e+00> : vector<64x16xf32>
    %3 = tpu.matmul %1, %2, %cst {dimension_numbers = #tpu.dot_dimension_numbers<[1], [0], [0], [1], [0, 0, 1, 1], [], []>} : vector<64x32xf32>, vector<32x16xf32>, vector<64x16xf32> -> vector<64x16xf32>
    %c0_3 = arith.constant 0 : index
    %c0_4 = arith.constant 0 : index
    %4 = vector.load %arg3[%c0_3, %c0_4] : memref<1x16xf32, #tpu.memory_space<vmem>>, vector<1x16xf32>
    %5 = vector.broadcast %4 : vector<1x16xf32> to vector<64x16xf32>
    %6 = arith.addf %3, %5 : vector<64x16xf32>
    %cst_5 = arith.constant 0.000000e+00 : f32
    %7 = vector.broadcast %cst_5 : f32 to vector<64x16xf32>
    %8 = arith.maximumf %6, %7 : vector<64x16xf32>
    %9 = vector.shape_cast %8 : vector<64x16xf32> to vector<64x1x16xf32>
    %10 = vector.broadcast %9 : vector<64x1x16xf32> to vector<64x2x16xf32>
    %11 = vector.shape_cast %10 : vector<64x2x16xf32> to vector<128x16xf32>
    %12 = vector.shape_cast %11 : vector<128x16xf32> to vector<8x16x16xf32>
    %13 = vector.shape_cast %12 : vector<8x16x16xf32> to vector<8x1x16x16xf32>
    %14 = vector.broadcast %13 : vector<8x1x16x16xf32> to vector<8x2x16x16xf32>
    %15 = vector.shape_cast %14 : vector<8x2x16x16xf32> to vector<16x16x16xf32>
    %c0_6 = arith.constant 0 : index
    %c0_7 = arith.constant 0 : index
    %c0_8 = arith.constant 0 : index
    %c0_9 = arith.constant 0 : index
    %16 = vector.load %arg4[%c0_6, %c0_7, %c0_8, %c0_9] : memref<1x16x16x16xf32, #tpu.memory_space<vmem>>, vector<1x16x16x16xf32>
    %17 = vector.shape_cast %16 : vector<1x16x16x16xf32> to vector<16x16x16xf32>
    %18 = vector.shape_cast %15 : vector<16x16x16xf32> to vector<1x16x16x16xf32>
    tpu.vector_store %arg4[%c0_6, %c0_7, %c0_8, %c0_9], %18 {strides = array<i32>} : memref<1x16x16x16xf32, #tpu.memory_space<vmem>>, vector<1x16x16x16xf32>,
    return
  }
  func.func @transform_0(%arg0: i32) -> (i32, i32, i32) {
    %c0_i32 = arith.constant 0 : i32
    %c0_i32_0 = arith.constant 0 : i32
    %c0_i32_1 = arith.constant 0 : i32
    return %arg0, %c0_i32, %c0_i32_0 : i32, i32, i32
  }
  func.func @transform_1(%arg0: i32) -> (i32, i32) {
    %c0_i32 = arith.constant 0 : i32
    %c0_i32_0 = arith.constant 0 : i32
    %c0_i32_1 = arith.constant 0 : i32
    return %c0_i32, %c0_i32_0 : i32, i32
  }
  func.func @transform_2(%arg0: i32) -> (i32, i32) {
    %c0_i32 = arith.constant 0 : i32
    %c0_i32_0 = arith.constant 0 : i32
    %c0_i32_1 = arith.constant 0 : i32
    return %c0_i32, %c0_i32_0 : i32, i32
  }
  func.func @transform_3(%arg0: i32) -> (i32, i32, i32, i32) {
    %c0_i32 = arith.constant 0 : i32
    %c0_i32_0 = arith.constant 0 : i32
    %c0_i32_1 = arith.constant 0 : i32
    %c0_i32_2 = arith.constant 0 : i32
    return %arg0, %c0_i32, %c0_i32_0, %c0_i32_1 : i32, i32, i32, i32
  }
}

</mosaic_0001>

<llo_original>
// kernel: tpu_custom_call.1
$region0: #{tpu_custom_call.1}
  #allocation0 [shape = 'u32[]', space=smem, size = 0x4, offset = 0x4, fixed_abs, tag = 'smem constant byte address 0x4 - core index']
  #allocation1 [shape = 'u32[144,128]{1,0:T(1,128)}', space=vmem, size = 0x12000, scoped, tag = 'internal scratch']
  %s0 = inlined_call_operand.vmem [shape: f32[2,65,32], index: 0, kind: input, shape index: {}]
  %s1 = inlined_call_operand.vmem [shape: f32[32,16], index: 1, kind: input, shape index: {}]
  %s2 = inlined_call_operand.vmem [shape: f32[1,16], index: 2, kind: input, shape index: {}]
  %s3 = inlined_call_operand.hbm [shape: f32[2,16,16,16], index: 3, kind: output, shape index: {}]
  %s4 = sld [smem:[#allocation0]]
  $region45: #{tpu_custom_call.1} parent=0
    _
  %s6 = ssub.s32 1, %s4
  %s7 = scalar_select 0, %s6, %s4
  $region1: #{tpu_custom_call.1} parent=0
    #allocation2 [shape = 'u8[262144]{0}', space=vmem, size = 0x40000, scoped, tag = 'output window, operand 0']
    #allocation3 [shape = 's32[2]{0}', space=sflag, size = 0x8, scoped, tag = 'scoped memory for tpu_custom_call.1']
    %8 = vsyncpa [#allocation3], 0
    %s9 = scalar_lea.sflag [#allocation3], 1
    %10 = vsyncpa %s9, 0
    loop: start=0, step=1, limit=4
    $region2: #{tpu_custom_call.1} parent=1 // loop_pre_header
      _
    $region3: #{tpu_custom_call.1} parent=1 // loop_header
      %s12 = sphi 0, %s16
      %p13 = scmp.ge.s32.totalorder %s12, 4
      %s22 = sphi 0, %s24
      %s25 = sphi 0, %s22
      %s26 = sphi 0, %s25
      %s42 = sphi 0, %s26
      %s46 = sphi 0, %s46
      %s48 = sphi 0, %s46
      %s49 = sphi 0, %s48
      %s63 = sphi 0, %s49
      %s67 = sphi 0, %s67
      %s69 = sphi 0, %s67
      %s70 = sphi 0, %s69
      %s84 = sphi 0, %s70
      %s90 = sphi 0, %s92
      %s93 = sphi 0, %s90
      %s94 = sphi 0, %s93
      %s110 = sphi 0, %s94
    $region4: #{tpu_custom_call.1} parent=1 // loop_header_branch
      %15 = sbr.rel (%p13) target = $region8
    $region5: #{tpu_custom_call.1} parent=1 // loop_body
      %s17 = ssub.s32 %s12, 1
      %s18 = ssub.s32 %s12, 2
      %s19 = sadd.s32 %s12, 1
      %s20 = ssub.s32 %s12, %s19
      %p21 = scmp.eq.s32.totalorder %s20, 0
      %s23 = sadd.s32 %s22, 1
      %s24 = scalar_select %p21, %s22, %s23
      %p27 = pneg %p21
      %p28 = scmp.eq.s32.totalorder %s12, 1
      %p29 = por %p27, %p28
      %p30 = scmp.ne.s32.totalorder %s22, %s25
      %p31 = scmp.eq.s32.totalorder %s12, 0
      %p32 = por %p30, %p31
      %p33 = scmp.ne.s32.totalorder %s22, %s25
      %p34 = scmp.eq.s32.totalorder %s17, 1
      %p35 = por %p33, %p34
      %p36 = scmp.ne.s32.totalorder %s25, %s26
      %p37 = scmp.eq.s32.totalorder %s17, 0
      %p38 = por %p36, %p37
      %p39 = scmp.ne.s32.totalorder %s25, %s26
      %p40 = scmp.eq.s32.totalorder %s18, 1
      %p41 = por %p39, %p40
      %p43 = scmp.ne.s32.totalorder %s26, %s42
      %p44 = scmp.eq.s32.totalorder %s18, 0
      %p45 = por %p43, %p44
      %s47 = sadd.s32 %s46, 1
      %p50 = scmp.eq.s32.totalorder %s12, 1
      %p51 = scmp.ne.s32.totalorder %s46, %s48
      %p52 = scmp.eq.s32.totalorder %s12, 0
      %p53 = por %p51, %p52
      %p54 = scmp.ne.s32.totalorder %s46, %s48
      %p55 = scmp.eq.s32.totalorder %s17, 1
      %p56 = por %p54, %p55
      %p57 = scmp.ne.s32.totalorder %s48, %s49
      %p58 = scmp.eq.s32.totalorder %s17, 0
      %p59 = por %p57, %p58
      %p60 = scmp.ne.s32.totalorder %s48, %s49
      %p61 = scmp.eq.s32.totalorder %s18, 1
      %p62 = por %p60, %p61
      %p64 = scmp.ne.s32.totalorder %s49, %s63
      %p65 = scmp.eq.s32.totalorder %s18, 0
      %p66 = por %p64, %p65
      %s68 = sadd.s32 %s67, 1
      %p71 = scmp.eq.s32.totalorder %s12, 1
      %p72 = scmp.ne.s32.totalorder %s67, %s69
      %p73 = scmp.eq.s32.totalorder %s12, 0
      %p74 = por %p72, %p73
      %p75 = scmp.ne.s32.totalorder %s67, %s69
      %p76 = scmp.eq.s32.totalorder %s17, 1
      %p77 = por %p75, %p76
      %p78 = scmp.ne.s32.totalorder %s69, %s70
      %p79 = scmp.eq.s32.totalorder %s17, 0
      %p80 = por %p78, %p79
      %p81 = scmp.ne.s32.totalorder %s69, %s70
      %p82 = scmp.eq.s32.totalorder %s18, 1
      %p83 = por %p81, %p82
      %p85 = scmp.ne.s32.totalorder %s70, %s84
      %p86 = scmp.eq.s32.totalorder %s18, 0
      %p87 = por %p85, %p86
      %s88 = ssub.s32 %s12, %s19
      %p89 = scmp.eq.s32.totalorder %s88, 0
      %s91 = sadd.s32 %s90, 1
      %s92 = scalar_select %p89, %s90, %s91
      %p95 = pneg %p89
      %p96 = scmp.eq.s32.totalorder %s12, 1
      %p97 = por %p95, %p96
      %p98 = scmp.ne.s32.totalorder %s90, %s93
      %p99 = scmp.eq.s32.totalorder %s12, 0
      %p100 = por %p98, %p99
      %p101 = scmp.ne.s32.totalorder %s90, %s93
      %p102 = scmp.eq.s32.totalorder %s17, 1
      %p103 = por %p101, %p102
      %p104 = scmp.ne.s32.totalorder %s93, %s94
      %p105 = scmp.eq.s32.totalorder %s17, 0
      %p106 = por %p104, %p105
      %p107 = scmp.ne.s32.totalorder %s93, %s94
      %p108 = scmp.eq.s32.totalorder %s18, 1
      %p109 = por %p107, %p108
      %p111 = scmp.ne.s32.totalorder %s94, %s110
      %p112 = scmp.eq.s32.totalorder %s18, 0
      %p113 = por %p111, %p112
      %p114 = scmp.le.s32.totalorder 1, %s12
      %p115 = scmp.lt.s32.totalorder %s12, 3
      %p116 = pnand %p114, %p115
      %p117 = pneg %p116
      // Predicated region
      $region9: #{tpu_custom_call.1} parent=5 // pred_check
        _
      $region10: #{tpu_custom_call.1} parent=5 // pred_check_branch
        %119 = sbr.rel (%p116) target = $region12
      $region11: #{tpu_custom_call.1} parent=5 // pred_region
        %s120 = ssub.s32 %s12, 1
        // Predicated region
        $region13: #{tpu_custom_call.1} parent=11 // pred_check
          %p121 = pneg %p59
        $region14: #{tpu_custom_call.1} parent=11 // pred_check_branch
          %123 = sbr.rel (%p121) target = $region16
        $region15: #{tpu_custom_call.1} parent=11 // pred_region
          _
        $region16: #{tpu_custom_call.1} parent=11 // pred_fallthru
          _
        // Predicated region
        $region17: #{tpu_custom_call.1} parent=11 // pred_check
          %p124 = pneg %p80
        $region18: #{tpu_custom_call.1} parent=11 // pred_check_branch
          %126 = sbr.rel (%p124) target = $region20
        $region19: #{tpu_custom_call.1} parent=11 // pred_region
          _
        $region20: #{tpu_custom_call.1} parent=11 // pred_fallthru
          _
      $region12: #{tpu_custom_call.1} parent=5 // pred_fallthru
        _
      %p127 = scmp.lt.s32.totalorder %s12, 2
      // Predicated region
      $region21: #{tpu_custom_call.1} parent=5 // pred_check
        %p128 = pneg %p127
      $region22: #{tpu_custom_call.1} parent=5 // pred_check_branch
        %130 = sbr.rel (%p128) target = $region24
      $region23: #{tpu_custom_call.1} parent=5 // pred_region
        // Predicated region
        $region25: #{tpu_custom_call.1} parent=23 // pred_check
          %p131 = pneg %p32
        $region26: #{tpu_custom_call.1} parent=23 // pred_check_branch
          %133 = sbr.rel (%p131) target = $region28
        $region27: #{tpu_custom_call.1} parent=23 // pred_region
          %p134 = scmp.lt.s32.totalorder %s12, 1
          %s135 = scalar_select %p134, %s12, 1
          %s136 = smul.addr %s135, 9
          %s137 = smul.addr %s136, 8
          %s138 = scalar_lea.vmem %s0, %s137
        $region28: #{tpu_custom_call.1} parent=23 // pred_fallthru
          _
      $region24: #{tpu_custom_call.1} parent=5 // pred_fallthru
        _
      %p139 = scmp.le.s32.totalorder 1, %s12
      %p140 = scmp.lt.s32.totalorder %s12, 3
      %p141 = pnand %p139, %p140
      %p142 = pneg %p141
      // Predicated region
      $region29: #{tpu_custom_call.1} parent=5 // pred_check
        _
      $region30: #{tpu_custom_call.1} parent=5 // pred_check_branch
        %144 = sbr.rel (%p141) target = $region32
      $region31: #{tpu_custom_call.1} parent=5 // pred_region
        %s145 = ssub.s32 %s12, 1
        %p146 = scmp.lt.s32.totalorder %s17, 1
        %s147 = scalar_select %p146, %s17, 1
        %s148 = smul.addr %s147, 9
        %s149 = smul.addr %s148, 8
        %s150 = scalar_lea.vmem %s0, %s149
        %p151 = pneg %p38
        %p152 = pneg %p35
        %p153 = pneg %p59
        %p154 = pneg %p56
        %p155 = pneg %p80
        %p156 = pneg %p77
        %p157 = pneg %p106
        %p158 = pneg %p103
        %s159 = sand.u32 %s93, 1
        %s160 = scalar_lea.sflag [#allocation3], %s159
        %s161 = sand.u32 %s93, 1
        %s162 = smul.addr %s161, 256
        %s163 = scalar_lea.vmem [#allocation2], %s162
        %p164 = scmp.lt.s32.totalorder %s17, 1
        %s165 = scalar_select %p164, %s17, 1
        %s166 = smul.addr %s165, 9
        %s167 = smul.addr %s166, 8
        %s168 = scalar_lea.vmem %s0, %s167
        %v169 = vld [vmem:[%s168 + $0x1] sm:$0xff]
        %v170 = vld [vmem:[%s168 + $0x9] sm:$0xff]
        %v171 = vld [vmem:[%s168 + $0x11] sm:$0xff]
        %v172 = vld [vmem:[%s168 + $0x19] sm:$0xff]
        %v173 = vld [vmem:[%s168 + $0x21] sm:$0xff]
        %v174 = vld [vmem:[%s168 + $0x29] sm:$0xff]
        %v175 = vld [vmem:[%s168 + $0x31] sm:$0xff]
        %v176 = vld [vmem:[%s168 + $0x39] sm:$0xff]
        %v177 = vld [vmem:[%s1] sm:$0xff]
        %v178 = vld [vmem:[%s1 + $0x8] sm:$0xff]
        %v179 = vld [vmem:[%s1 + $0x10] sm:$0xff]
        %v180 = vld [vmem:[%s1 + $0x18] sm:$0xff]
        %v181 = vld [vmem:[%s2] sm:$0x1]
        %v183 = vlaneseq
        %v184 = vshrl.u32 %v183, 7
        %v185 = vsub.s32 0, %v184
        %v186 = vrot.slane %v181, %v185
        %vm188 = vcmask 261120
        %v190 = vsel %vm188, %v169, 0
        %v193 = vsel %vm188, %v170, 0
        %v196 = vsel %vm188, %v171, 0
        %v199 = vsel %vm188, %v172, 0
        %v202 = vsel %vm188, %v173, 0
        %v205 = vsel %vm188, %v174, 0
        %v208 = vsel %vm188, %v175, 0
        %v211 = vsel %vm188, %v176, 0
        %213 = vmatprep.subr.mxu0 0.0
        %214 = vmatpush1.msra.mxu0 %v177
        %215 = vmatprep.subr.mxu0 0.0
        %216 = vmatpush1.msra.mxu0 %v178
        %217 = vmatprep.subr.mxu0 0.0
        %218 = vmatpush1.msra.mxu0 %v179
        %219 = vmatprep.subr.mxu0 0.0
        %220 = vmatpush1.msra.mxu0 %v180
        %221 = vmatprep.subr.mxu0 0.0
        %222 = vmatpush1.msra.mxu0 0.0
        %223 = vmatprep.subr.mxu0 0.0
        %224 = vmatpush1.msra.mxu0 0.0
        %225 = vmatprep.subr.mxu0 0.0
        %226 = vmatpush1.msra.mxu0 0.0
        %227 = vmatprep.subr.mxu0 0.0
        %228 = vmatpush1.msra.mxu0 0.0
        %229 = vmatprep.subr.mxu0 0.0
        %230 = vmatpush1.msra.mxu0 0.0
        %231 = vmatprep.subr.mxu0 0.0
        %232 = vmatpush1.msra.mxu0 0.0
        %233 = vmatprep.subr.mxu0 0.0
        %234 = vmatpush1.msra.mxu0 0.0
        %235 = vmatprep.subr.mxu0 0.0
        %236 = vmatpush1.msra.mxu0 0.0
        %237 = vmatprep.subr.mxu0 0.0
        %238 = vmatpush1.msra.mxu0 0.0
        %239 = vmatprep.subr.mxu0 0.0
        %240 = vmatpush1.msra.mxu0 0.0
        %241 = vmatprep.subr.mxu0 0.0
        %242 = vmatpush1.msra.mxu0 0.0
        %243 = vmatprep.subr.mxu0 0.0
        %244 = vmatpush1.msra.mxu0 0.0
        %245 = vmatprep.subr.mxu0 0.0
        %246 = vmatpush1.msra.mxu0 0.0
        %247 = vmatprep.subr.mxu0 0.0
        %248 = vmatpush1.msra.mxu0 0.0
        %249 = vmatprep.subr.mxu0 0.0
        %250 = vmatpush1.msra.mxu0 0.0
        %251 = vmatprep.subr.mxu0 0.0
        %252 = vmatpush1.msra.mxu0 0.0
        %253 = vmatprep.subr.mxu0 0.0
        %254 = vmatpush1.msra.mxu0 0.0
        %255 = vmatprep.subr.mxu0 0.0
        %256 = vmatpush1.msra.mxu0 0.0
        %257 = vmatprep.subr.mxu0 0.0
        %258 = vmatpush1.msra.mxu0 0.0
        %259 = vmatprep.subr.mxu0 0.0
        %260 = vmatpush1.msra.mxu0 0.0
        %261 = vmatprep.subr.mxu0 0.0
        %262 = vmatpush1.msra.mxu0 0.0
        %263 = vmatprep.subr.mxu0 0.0
        %264 = vmatpush1.msra.mxu0 0.0
        %265 = vmatprep.subr.mxu0 0.0
        %266 = vmatpush1.msra.mxu0 0.0
        %267 = vmatprep.subr.mxu0 0.0
        %268 = vmatpush1.msra.mxu0 0.0
        %269 = vmatprep.subr.mxu0 0.0
        %270 = vmatpush1.msra.mxu0 0.0
        %271 = vmatprep.subr.mxu0 0.0
        %272 = vmatpush1.msra.mxu0 0.0
        %273 = vmatprep.subr.mxu0 0.0
        %274 = vmatpush1.msra.mxu0 0.0
        %275 = vmatprep.subr.mxu0 0.0
        %276 = vmatpush1.msra.mxu0 0.0
        %277 = vmatprep.mubr.f32.mxu0 0.0
        %278 = vmatmul.mubr.f32.gmra.mrb[0].mxu0 %v190
        %v279 = vpop.f32.mrb[0].mxu0
        %v280 = vadd.f32 %v186, %v279
        %v281 = vpop.f32.mrb[0].mxu0
        %282 = vmatprep.mubr.f32.mxu0 0.0
        %283 = vmatmul.mubr.f32.gmra.mrb[0].mxu0 %v193
        %v284 = vpop.f32.mrb[0].mxu0
        %v285 = vadd.f32 %v186, %v284
        %v286 = vpop.f32.mrb[0].mxu0
        %287 = vmatprep.mubr.f32.mxu0 0.0
        %288 = vmatmul.mubr.f32.gmra.mrb[0].mxu0 %v196
        %v289 = vpop.f32.mrb[0].mxu0
        %v290 = vadd.f32 %v186, %v289
        %v291 = vpop.f32.mrb[0].mxu0
        %292 = vmatprep.mubr.f32.mxu0 0.0
        %293 = vmatmul.mubr.f32.gmra.mrb[0].mxu0 %v199
        %v294 = vpop.f32.mrb[0].mxu0
        %v295 = vadd.f32 %v186, %v294
        %v296 = vpop.f32.mrb[0].mxu0
        %297 = vmatprep.mubr.f32.mxu0 0.0
        %298 = vmatmul.mubr.f32.gmra.mrb[0].mxu0 %v202
        %v299 = vpop.f32.mrb[0].mxu0
        %v300 = vadd.f32 %v186, %v299
        %v301 = vpop.f32.mrb[0].mxu0
        %302 = vmatprep.mubr.f32.mxu0 0.0
        %303 = vmatmul.mubr.f32.gmra.mrb[0].mxu0 %v205
        %v304 = vpop.f32.mrb[0].mxu0
        %v305 = vadd.f32 %v186, %v304
        %v306 = vpop.f32.mrb[0].mxu0
        %307 = vmatprep.mubr.f32.mxu0 0.0
        %308 = vmatmul.mubr.f32.gmra.mrb[0].mxu0 %v208
        %v309 = vpop.f32.mrb[0].mxu0
        %v310 = vadd.f32 %v186, %v309
        %v311 = vpop.f32.mrb[0].mxu0
        %312 = vmatprep.mubr.f32.mxu0 0.0
        %313 = vmatmul.mubr.f32.gmra.mrb[0].mxu0 %v211
        %v314 = vpop.f32.mrb[0].mxu0
        %v315 = vadd.f32 %v186, %v314
        %v316 = vpop.f32.mrb[0].mxu0
        %317 = vdwg.mxu0
        %v318 = vmax.f32 %v280, 0.0
        %v319 = vmax.f32 %v285, 0.0
        %v320 = vmax.f32 %v290, 0.0
        %v321 = vmax.f32 %v295, 0.0
        %v322 = vmax.f32 %v300, 0.0
        %v323 = vmax.f32 %v305, 0.0
        %v324 = vmax.f32 %v310, 0.0
        %v325 = vmax.f32 %v315, 0.0
        %v334 = vcombine.high %v318, %v318
        %v336 = vunpack.c.l.s4 1966171168
        %v337 = vunpack.c.0.s8 %v336
        %v338 = vlaneseq
        %v339 = vshrl.u32 %v338, 7
        %v340 = vsub.s32 %v337, %v339
        %v341 = vrot.slane %v318, %v340
        %v343 = vunpack.c.l.s4 1966171168
        %v344 = vunpack.c.0.s8 %v343
        %v345 = vlaneseq
        %v346 = vshrl.u32 %v345, 7
        %v347 = vsub.s32 %v344, %v346
        %v348 = vrot.slane %v334, %v347
        %v349 = vcombine.high %v341, %v341
        %v350 = vcombine.high %v348, %v348
        %v352 = vunpack.c.l.s4 1966171168
        %v353 = vunpack.c.0.s8 %v352
        %v354 = vlaneseq
        %v355 = vshrl.u32 %v354, 7
        %v356 = vsub.s32 %v353, %v355
        %v357 = vrot.slane %v341, %v356
        %v359 = vunpack.c.l.s4 1966171168
        %v360 = vunpack.c.0.s8 %v359
        %v361 = vlaneseq
        %v362 = vshrl.u32 %v361, 7
        %v363 = vsub.s32 %v360, %v362
        %v364 = vrot.slane %v348, %v363
        %v366 = vunpack.c.l.s4 1966171168
        %v367 = vunpack.c.0.s8 %v366
        %v368 = vlaneseq
        %v369 = vshrl.u32 %v368, 7
        %v370 = vsub.s32 %v367, %v369
        %v371 = vrot.slane %v349, %v370
        %v373 = vunpack.c.l.s4 1966171168
        %v374 = vunpack.c.0.s8 %v373
        %v375 = vlaneseq
        %v376 = vshrl.u32 %v375, 7
        %v377 = vsub.s32 %v374, %v376
        %v378 = vrot.slane %v350, %v377
        %v379 = vcombine.high %v357, %v357
        %v380 = vcombine.high %v364, %v364
        %v381 = vcombine.high %v371, %v371
        %v382 = vcombine.high %v378, %v378
        %v383 = vcombine.high %v319, %v319
        %v385 = vunpack.c.l.s4 1966171168
        %v386 = vunpack.c.0.s8 %v385
        %v387 = vlaneseq
        %v388 = vshrl.u32 %v387, 7
        %v389 = vsub.s32 %v386, %v388
        %v390 = vrot.slane %v319, %v389
        %v392 = vunpack.c.l.s4 1966171168
        %v393 = vunpack.c.0.s8 %v392
        %v394 = vlaneseq
        %v395 = vshrl.u32 %v394, 7
        %v396 = vsub.s32 %v393, %v395
        %v397 = vrot.slane %v383, %v396
        %v398 = vcombine.high %v390, %v390
        %v399 = vcombine.high %v397, %v397
        %v401 = vunpack.c.l.s4 1966171168
        %v402 = vunpack.c.0.s8 %v401
        %v403 = vlaneseq
        %v404 = vshrl.u32 %v403, 7
        %v405 = vsub.s32 %v402, %v404
        %v406 = vrot.slane %v390, %v405
        %v408 = vunpack.c.l.s4 1966171168
        %v409 = vunpack.c.0.s8 %v408
        %v410 = vlaneseq
        %v411 = vshrl.u32 %v410, 7
        %v412 = vsub.s32 %v409, %v411
        %v413 = vrot.slane %v397, %v412
        %v415 = vunpack.c.l.s4 1966171168
        %v416 = vunpack.c.0.s8 %v415
        %v417 = vlaneseq
        %v418 = vshrl.u32 %v417, 7
        %v419 = vsub.s32 %v416, %v418
        %v420 = vrot.slane %v398, %v419
        %v422 = vunpack.c.l.s4 1966171168
        %v423 = vunpack.c.0.s8 %v422
        %v424 = vlaneseq
        %v425 = vshrl.u32 %v424, 7
        %v426 = vsub.s32 %v423, %v425
        %v427 = vrot.slane %v399, %v426
        %v428 = vcombine.high %v406, %v406
        %v429 = vcombine.high %v413, %v413
        %v430 = vcombine.high %v420, %v420
        %v431 = vcombine.high %v427, %v427
        %v432 = vcombine.high %v320, %v320
        %v434 = vunpack.c.l.s4 1966171168
        %v435 = vunpack.c.0.s8 %v434
        %v436 = vlaneseq
        %v437 = vshrl.u32 %v436, 7
        %v438 = vsub.s32 %v435, %v437
        %v439 = vrot.slane %v320, %v438
        %v441 = vunpack.c.l.s4 1966171168
        %v442 = vunpack.c.0.s8 %v441
        %v443 = vlaneseq
        %v444 = vshrl.u32 %v443, 7
        %v445 = vsub.s32 %v442, %v444
        %v446 = vrot.slane %v432, %v445
        %v447 = vcombine.high %v439, %v439
        %v448 = vcombine.high %v446, %v446
        %v450 = vunpack.c.l.s4 1966171168
        %v451 = vunpack.c.0.s8 %v450
        %v452 = vlaneseq
        %v453 = vshrl.u32 %v452, 7
        %v454 = vsub.s32 %v451, %v453
        %v455 = vrot.slane %v439, %v454
        %v457 = vunpack.c.l.s4 1966171168
        %v458 = vunpack.c.0.s8 %v457
        %v459 = vlaneseq
        %v460 = vshrl.u32 %v459, 7
        %v461 = vsub.s32 %v458, %v460
        %v462 = vrot.slane %v446, %v461
        %v464 = vunpack.c.l.s4 1966171168
        %v465 = vunpack.c.0.s8 %v464
        %v466 = vlaneseq
        %v467 = vshrl.u32 %v466, 7
        %v468 = vsub.s32 %v465, %v467
        %v469 = vrot.slane %v447, %v468
        %v471 = vunpack.c.l.s4 1966171168
        %v472 = vunpack.c.0.s8 %v471
        %v473 = vlaneseq
        %v474 = vshrl.u32 %v473, 7
        %v475 = vsub.s32 %v472, %v474
        %v476 = vrot.slane %v448, %v475
        %v477 = vcombine.high %v455, %v455
        %v478 = vcombine.high %v462, %v462
        %v479 = vcombine.high %v469, %v469
        %v480 = vcombine.high %v476, %v476
        %v481 = vcombine.high %v321, %v321
        %v483 = vunpack.c.l.s4 1966171168
        %v484 = vunpack.c.0.s8 %v483
        %v485 = vlaneseq
        %v486 = vshrl.u32 %v485, 7
        %v487 = vsub.s32 %v484, %v486
        %v488 = vrot.slane %v321, %v487
        %v490 = vunpack.c.l.s4 1966171168
        %v491 = vunpack.c.0.s8 %v490
        %v492 = vlaneseq
        %v493 = vshrl.u32 %v492, 7
        %v494 = vsub.s32 %v491, %v493
        %v495 = vrot.slane %v481, %v494
        %v496 = vcombine.high %v488, %v488
        %v497 = vcombine.high %v495, %v495
        %v499 = vunpack.c.l.s4 1966171168
        %v500 = vunpack.c.0.s8 %v499
        %v501 = vlaneseq
        %v502 = vshrl.u32 %v501, 7
        %v503 = vsub.s32 %v500, %v502
        %v504 = vrot.slane %v488, %v503
        %v506 = vunpack.c.l.s4 1966171168
        %v507 = vunpack.c.0.s8 %v506
        %v508 = vlaneseq
        %v509 = vshrl.u32 %v508, 7
        %v510 = vsub.s32 %v507, %v509
        %v511 = vrot.slane %v495, %v510
        %v513 = vunpack.c.l.s4 1966171168
        %v514 = vunpack.c.0.s8 %v513
        %v515 = vlaneseq
        %v516 = vshrl.u32 %v515, 7
        %v517 = vsub.s32 %v514, %v516
        %v518 = vrot.slane %v496, %v517
        %v520 = vunpack.c.l.s4 1966171168
        %v521 = vunpack.c.0.s8 %v520
        %v522 = vlaneseq
        %v523 = vshrl.u32 %v522, 7
        %v524 = vsub.s32 %v521, %v523
        %v525 = vrot.slane %v497, %v524
        %v526 = vcombine.high %v504, %v504
        %v527 = vcombine.high %v511, %v511
        %v528 = vcombine.high %v518, %v518
        %v529 = vcombine.high %v525, %v525
        %v530 = vcombine.high %v322, %v322
        %v532 = vunpack.c.l.s4 1966171168
        %v533 = vunpack.c.0.s8 %v532
        %v534 = vlaneseq
        %v535 = vshrl.u32 %v534, 7
        %v536 = vsub.s32 %v533, %v535
        %v537 = vrot.slane %v322, %v536
        %v539 = vunpack.c.l.s4 1966171168
        %v540 = vunpack.c.0.s8 %v539
        %v541 = vlaneseq
        %v542 = vshrl.u32 %v541, 7
        %v543 = vsub.s32 %v540, %v542
        %v544 = vrot.slane %v530, %v543
        %v545 = vcombine.high %v537, %v537
        %v546 = vcombine.high %v544, %v544
        %v548 = vunpack.c.l.s4 1966171168
        %v549 = vunpack.c.0.s8 %v548
        %v550 = vlaneseq
        %v551 = vshrl.u32 %v550, 7
        %v552 = vsub.s32 %v549, %v551
        %v553 = vrot.slane %v537, %v552
        %v555 = vunpack.c.l.s4 1966171168
        %v556 = vunpack.c.0.s8 %v555
        %v557 = vlaneseq
        %v558 = vshrl.u32 %v557, 7
        %v559 = vsub.s32 %v556, %v558
        %v560 = vrot.slane %v544, %v559
        %v562 = vunpack.c.l.s4 1966171168
        %v563 = vunpack.c.0.s8 %v562
        %v564 = vlaneseq
        %v565 = vshrl.u32 %v564, 7
        %v566 = vsub.s32 %v563, %v565
        %v567 = vrot.slane %v545, %v566
        %v569 = vunpack.c.l.s4 1966171168
        %v570 = vunpack.c.0.s8 %v569
        %v571 = vlaneseq
        %v572 = vshrl.u32 %v571, 7
        %v573 = vsub.s32 %v570, %v572
        %v574 = vrot.slane %v546, %v573
        %v575 = vcombine.high %v553, %v553
        %v576 = vcombine.high %v560, %v560
        %v577 = vcombine.high %v567, %v567
        %v578 = vcombine.high %v574, %v574
        %v579 = vcombine.high %v323, %v323
        %v581 = vunpack.c.l.s4 1966171168
        %v582 = vunpack.c.0.s8 %v581
        %v583 = vlaneseq
        %v584 = vshrl.u32 %v583, 7
        %v585 = vsub.s32 %v582, %v584
        %v586 = vrot.slane %v323, %v585
        %v588 = vunpack.c.l.s4 1966171168
        %v589 = vunpack.c.0.s8 %v588
        %v590 = vlaneseq
        %v591 = vshrl.u32 %v590, 7
        %v592 = vsub.s32 %v589, %v591
        %v593 = vrot.slane %v579, %v592
        %v594 = vcombine.high %v586, %v586
        %v595 = vcombine.high %v593, %v593
        %v597 = vunpack.c.l.s4 1966171168
        %v598 = vunpack.c.0.s8 %v597
        %v599 = vlaneseq
        %v600 = vshrl.u32 %v599, 7
        %v601 = vsub.s32 %v598, %v600
        %v602 = vrot.slane %v586, %v601
        %v604 = vunpack.c.l.s4 1966171168
        %v605 = vunpack.c.0.s8 %v604
        %v606 = vlaneseq
        %v607 = vshrl.u32 %v606, 7
        %v608 = vsub.s32 %v605, %v607
        %v609 = vrot.slane %v593, %v608
        %v611 = vunpack.c.l.s4 1966171168
        %v612 = vunpack.c.0.s8 %v611
        %v613 = vlaneseq
        %v614 = vshrl.u32 %v613, 7
        %v615 = vsub.s32 %v612, %v614
        %v616 = vrot.slane %v594, %v615
        %v618 = vunpack.c.l.s4 1966171168
        %v619 = vunpack.c.0.s8 %v618
        %v620 = vlaneseq
        %v621 = vshrl.u32 %v620, 7
        %v622 = vsub.s32 %v619, %v621
        %v623 = vrot.slane %v595, %v622
        %v624 = vcombine.high %v602, %v602
        %v625 = vcombine.high %v609, %v609
        %v626 = vcombine.high %v616, %v616
        %v627 = vcombine.high %v623, %v623
        %v628 = vcombine.high %v324, %v324
        %v630 = vunpack.c.l.s4 1966171168
        %v631 = vunpack.c.0.s8 %v630
        %v632 = vlaneseq
        %v633 = vshrl.u32 %v632, 7
        %v634 = vsub.s32 %v631, %v633
        %v635 = vrot.slane %v324, %v634
        %v637 = vunpack.c.l.s4 1966171168
        %v638 = vunpack.c.0.s8 %v637
        %v639 = vlaneseq
        %v640 = vshrl.u32 %v639, 7
        %v641 = vsub.s32 %v638, %v640
        %v642 = vrot.slane %v628, %v641
        %v643 = vcombine.high %v635, %v635
        %v644 = vcombine.high %v642, %v642
        %v646 = vunpack.c.l.s4 1966171168
        %v647 = vunpack.c.0.s8 %v646
        %v648 = vlaneseq
        %v649 = vshrl.u32 %v648, 7
        %v650 = vsub.s32 %v647, %v649
        %v651 = vrot.slane %v635, %v650
        %v653 = vunpack.c.l.s4 1966171168
        %v654 = vunpack.c.0.s8 %v653
        %v655 = vlaneseq
        %v656 = vshrl.u32 %v655, 7
        %v657 = vsub.s32 %v654, %v656
        %v658 = vrot.slane %v642, %v657
        %v660 = vunpack.c.l.s4 1966171168
        %v661 = vunpack.c.0.s8 %v660
        %v662 = vlaneseq
        %v663 = vshrl.u32 %v662, 7
        %v664 = vsub.s32 %v661, %v663
        %v665 = vrot.slane %v643, %v664
        %v667 = vunpack.c.l.s4 1966171168
        %v668 = vunpack.c.0.s8 %v667
        %v669 = vlaneseq
        %v670 = vshrl.u32 %v669, 7
        %v671 = vsub.s32 %v668, %v670
        %v672 = vrot.slane %v644, %v671
        %v673 = vcombine.high %v651, %v651
        %v674 = vcombine.high %v658, %v658
        %v675 = vcombine.high %v665, %v665
        %v676 = vcombine.high %v672, %v672
        %v677 = vcombine.high %v325, %v325
        %v679 = vunpack.c.l.s4 1966171168
        %v680 = vunpack.c.0.s8 %v679
        %v681 = vlaneseq
        %v682 = vshrl.u32 %v681, 7
        %v683 = vsub.s32 %v680, %v682
        %v684 = vrot.slane %v325, %v683
        %v686 = vunpack.c.l.s4 1966171168
        %v687 = vunpack.c.0.s8 %v686
        %v688 = vlaneseq
        %v689 = vshrl.u32 %v688, 7
        %v690 = vsub.s32 %v687, %v689
        %v691 = vrot.slane %v677, %v690
        %v692 = vcombine.high %v684, %v684
        %v693 = vcombine.high %v691, %v691
        %v695 = vunpack.c.l.s4 1966171168
        %v696 = vunpack.c.0.s8 %v695
        %v697 = vlaneseq
        %v698 = vshrl.u32 %v697, 7
        %v699 = vsub.s32 %v696, %v698
        %v700 = vrot.slane %v684, %v699
        %v702 = vunpack.c.l.s4 1966171168
        %v703 = vunpack.c.0.s8 %v702
        %v704 = vlaneseq
        %v705 = vshrl.u32 %v704, 7
        %v706 = vsub.s32 %v703, %v705
        %v707 = vrot.slane %v691, %v706
        %v709 = vunpack.c.l.s4 1966171168
        %v710 = vunpack.c.0.s8 %v709
        %v711 = vlaneseq
        %v712 = vshrl.u32 %v711, 7
        %v713 = vsub.s32 %v710, %v712
        %v714 = vrot.slane %v692, %v713
        %v716 = vunpack.c.l.s4 1966171168
        %v717 = vunpack.c.0.s8 %v716
        %v718 = vlaneseq
        %v719 = vshrl.u32 %v718, 7
        %v720 = vsub.s32 %v717, %v719
        %v721 = vrot.slane %v693, %v720
        %v722 = vcombine.high %v700, %v700
        %v723 = vcombine.high %v707, %v707
        %v724 = vcombine.high %v714, %v714
        %v725 = vcombine.high %v721, %v721
        %v726 = vlaneseq
        %v727 = vshrl.u32 %v726, 7
        %v728 = vsub.s32 0, %v727
        %v729 = vrot.slane %v357, %v728
        %v730 = vlaneseq
        %v731 = vshrl.u32 %v730, 7
        %v732 = vsub.s32 0, %v731
        %v733 = vrot.slane %v371, %v732
        %v734 = vlaneseq
        %v735 = vshrl.u32 %v734, 7
        %v736 = vsub.s32 0, %v735
        %v737 = vrot.slane %v379, %v736
        %v738 = vlaneseq
        %v739 = vshrl.u32 %v738, 7
        %v740 = vsub.s32 0, %v739
        %v741 = vrot.slane %v381, %v740
        %v742 = vlaneseq
        %v743 = vshrl.u32 %v742, 7
        %v744 = vsub.s32 0, %v743
        %v745 = vrot.slane %v364, %v744
        %v746 = vlaneseq
        %v747 = vshrl.u32 %v746, 7
        %v748 = vsub.s32 0, %v747
        %v749 = vrot.slane %v378, %v748
        %v750 = vlaneseq
        %v751 = vshrl.u32 %v750, 7
        %v752 = vsub.s32 0, %v751
        %v753 = vrot.slane %v380, %v752
        %v754 = vlaneseq
        %v755 = vshrl.u32 %v754, 7
        %v756 = vsub.s32 0, %v755
        %v757 = vrot.slane %v382, %v756
        %v758 = vlaneseq
        %v759 = vshrl.u32 %v758, 7
        %v760 = vsub.s32 0, %v759
        %v761 = vrot.slane %v406, %v760
        %v762 = vlaneseq
        %v763 = vshrl.u32 %v762, 7
        %v764 = vsub.s32 0, %v763
        %v765 = vrot.slane %v420, %v764
        %v766 = vlaneseq
        %v767 = vshrl.u32 %v766, 7
        %v768 = vsub.s32 0, %v767
        %v769 = vrot.slane %v428, %v768
        %v770 = vlaneseq
        %v771 = vshrl.u32 %v770, 7
        %v772 = vsub.s32 0, %v771
        %v773 = vrot.slane %v430, %v772
        %v774 = vlaneseq
        %v775 = vshrl.u32 %v774, 7
        %v776 = vsub.s32 0, %v775
        %v777 = vrot.slane %v413, %v776
        %v778 = vlaneseq
        %v779 = vshrl.u32 %v778, 7
        %v780 = vsub.s32 0, %v779
        %v781 = vrot.slane %v427, %v780
        %v782 = vlaneseq
        %v783 = vshrl.u32 %v782, 7
        %v784 = vsub.s32 0, %v783
        %v785 = vrot.slane %v429, %v784
        %v786 = vlaneseq
        %v787 = vshrl.u32 %v786, 7
        %v788 = vsub.s32 0, %v787
        %v789 = vrot.slane %v431, %v788
        %v790 = vlaneseq
        %v791 = vshrl.u32 %v790, 7
        %v792 = vsub.s32 0, %v791
        %v793 = vrot.slane %v455, %v792
        %v794 = vlaneseq
        %v795 = vshrl.u32 %v794, 7
        %v796 = vsub.s32 0, %v795
        %v797 = vrot.slane %v469, %v796
        %v798 = vlaneseq
        %v799 = vshrl.u32 %v798, 7
        %v800 = vsub.s32 0, %v799
        %v801 = vrot.slane %v477, %v800
        %v802 = vlaneseq
        %v803 = vshrl.u32 %v802, 7
        %v804 = vsub.s32 0, %v803
        %v805 = vrot.slane %v479, %v804
        %v806 = vlaneseq
        %v807 = vshrl.u32 %v806, 7
        %v808 = vsub.s32 0, %v807
        %v809 = vrot.slane %v462, %v808
        %v810 = vlaneseq
        %v811 = vshrl.u32 %v810, 7
        %v812 = vsub.s32 0, %v811
        %v813 = vrot.slane %v476, %v812
        %v814 = vlaneseq
        %v815 = vshrl.u32 %v814, 7
        %v816 = vsub.s32 0, %v815
        %v817 = vrot.slane %v478, %v816
        %v818 = vlaneseq
        %v819 = vshrl.u32 %v818, 7
        %v820 = vsub.s32 0, %v819
        %v821 = vrot.slane %v480, %v820
        %v822 = vlaneseq
        %v823 = vshrl.u32 %v822, 7
        %v824 = vsub.s32 0, %v823
        %v825 = vrot.slane %v504, %v824
        %v826 = vlaneseq
        %v827 = vshrl.u32 %v826, 7
        %v828 = vsub.s32 0, %v827
        %v829 = vrot.slane %v518, %v828
        %v830 = vlaneseq
        %v831 = vshrl.u32 %v830, 7
        %v832 = vsub.s32 0, %v831
        %v833 = vrot.slane %v526, %v832
        %v834 = vlaneseq
        %v835 = vshrl.u32 %v834, 7
        %v836 = vsub.s32 0, %v835
        %v837 = vrot.slane %v528, %v836
        %v838 = vlaneseq
        %v839 = vshrl.u32 %v838, 7
        %v840 = vsub.s32 0, %v839
        %v841 = vrot.slane %v511, %v840
        %v842 = vlaneseq
        %v843 = vshrl.u32 %v842, 7
        %v844 = vsub.s32 0, %v843
        %v845 = vrot.slane %v525, %v844
        %v846 = vlaneseq
        %v847 = vshrl.u32 %v846, 7
        %v848 = vsub.s32 0, %v847
        %v849 = vrot.slane %v527, %v848
        %v850 = vlaneseq
        %v851 = vshrl.u32 %v850, 7
        %v852 = vsub.s32 0, %v851
        %v853 = vrot.slane %v529, %v852
        %v854 = vlaneseq
        %v855 = vshrl.u32 %v854, 7
        %v856 = vsub.s32 0, %v855
        %v857 = vrot.slane %v553, %v856
        %v858 = vlaneseq
        %v859 = vshrl.u32 %v858, 7
        %v860 = vsub.s32 0, %v859
        %v861 = vrot.slane %v567, %v860
        %v862 = vlaneseq
        %v863 = vshrl.u32 %v862, 7
        %v864 = vsub.s32 0, %v863
        %v865 = vrot.slane %v575, %v864
        %v866 = vlaneseq
        %v867 = vshrl.u32 %v866, 7
        %v868 = vsub.s32 0, %v867
        %v869 = vrot.slane %v577, %v868
        %v870 = vlaneseq
        %v871 = vshrl.u32 %v870, 7
        %v872 = vsub.s32 0, %v871
        %v873 = vrot.slane %v560, %v872
        %v874 = vlaneseq
        %v875 = vshrl.u32 %v874, 7
        %v876 = vsub.s32 0, %v875
        %v877 = vrot.slane %v574, %v876
        %v878 = vlaneseq
        %v879 = vshrl.u32 %v878, 7
        %v880 = vsub.s32 0, %v879
        %v881 = vrot.slane %v576, %v880
        %v882 = vlaneseq
        %v883 = vshrl.u32 %v882, 7
        %v884 = vsub.s32 0, %v883
        %v885 = vrot.slane %v578, %v884
        %v886 = vlaneseq
        %v887 = vshrl.u32 %v886, 7
        %v888 = vsub.s32 0, %v887
        %v889 = vrot.slane %v602, %v888
        %v890 = vlaneseq
        %v891 = vshrl.u32 %v890, 7
        %v892 = vsub.s32 0, %v891
        %v893 = vrot.slane %v616, %v892
        %v894 = vlaneseq
        %v895 = vshrl.u32 %v894, 7
        %v896 = vsub.s32 0, %v895
        %v897 = vrot.slane %v624, %v896
        %v898 = vlaneseq
        %v899 = vshrl.u32 %v898, 7
        %v900 = vsub.s32 0, %v899
        %v901 = vrot.slane %v626, %v900
        %v902 = vlaneseq
        %v903 = vshrl.u32 %v902, 7
        %v904 = vsub.s32 0, %v903
        %v905 = vrot.slane %v609, %v904
        %v906 = vlaneseq
        %v907 = vshrl.u32 %v906, 7
        %v908 = vsub.s32 0, %v907
        %v909 = vrot.slane %v623, %v908
        %v910 = vlaneseq
        %v911 = vshrl.u32 %v910, 7
        %v912 = vsub.s32 0, %v911
        %v913 = vrot.slane %v625, %v912
        %v914 = vlaneseq
        %v915 = vshrl.u32 %v914, 7
        %v916 = vsub.s32 0, %v915
        %v917 = vrot.slane %v627, %v916
        %v918 = vlaneseq
        %v919 = vshrl.u32 %v918, 7
        %v920 = vsub.s32 0, %v919
        %v921 = vrot.slane %v651, %v920
        %v922 = vlaneseq
        %v923 = vshrl.u32 %v922, 7
        %v924 = vsub.s32 0, %v923
        %v925 = vrot.slane %v665, %v924
        %v926 = vlaneseq
        %v927 = vshrl.u32 %v926, 7
        %v928 = vsub.s32 0, %v927
        %v929 = vrot.slane %v673, %v928
        %v930 = vlaneseq
        %v931 = vshrl.u32 %v930, 7
        %v932 = vsub.s32 0, %v931
        %v933 = vrot.slane %v675, %v932
        %v934 = vlaneseq
        %v935 = vshrl.u32 %v934, 7
        %v936 = vsub.s32 0, %v935
        %v937 = vrot.slane %v658, %v936
        %v938 = vlaneseq
        %v939 = vshrl.u32 %v938, 7
        %v940 = vsub.s32 0, %v939
        %v941 = vrot.slane %v672, %v940
        %v942 = vlaneseq
        %v943 = vshrl.u32 %v942, 7
        %v944 = vsub.s32 0, %v943
        %v945 = vrot.slane %v674, %v944
        %v946 = vlaneseq
        %v947 = vshrl.u32 %v946, 7
        %v948 = vsub.s32 0, %v947
        %v949 = vrot.slane %v676, %v948
        %v950 = vlaneseq
        %v951 = vshrl.u32 %v950, 7
        %v952 = vsub.s32 0, %v951
        %v953 = vrot.slane %v700, %v952
        %v954 = vlaneseq
        %v955 = vshrl.u32 %v954, 7
        %v956 = vsub.s32 0, %v955
        %v957 = vrot.slane %v714, %v956
        %v958 = vlaneseq
        %v959 = vshrl.u32 %v958, 7
        %v960 = vsub.s32 0, %v959
        %v961 = vrot.slane %v722, %v960
        %v962 = vlaneseq
        %v963 = vshrl.u32 %v962, 7
        %v964 = vsub.s32 0, %v963
        %v965 = vrot.slane %v724, %v964
        %v966 = vlaneseq
        %v967 = vshrl.u32 %v966, 7
        %v968 = vsub.s32 0, %v967
        %v969 = vrot.slane %v707, %v968
        %v970 = vlaneseq
        %v971 = vshrl.u32 %v970, 7
        %v972 = vsub.s32 0, %v971
        %v973 = vrot.slane %v721, %v972
        %v974 = vlaneseq
        %v975 = vshrl.u32 %v974, 7
        %v976 = vsub.s32 0, %v975
        %v977 = vrot.slane %v723, %v976
        %v978 = vlaneseq
        %v979 = vshrl.u32 %v978, 7
        %v980 = vsub.s32 0, %v979
        %v981 = vrot.slane %v725, %v980
        %v982 = vcombine.low %v729, %v733
        %v983 = vcombine.low %v737, %v741
        %v985 = vunpack.c.l.s4 1983009808
        %v986 = vunpack.c.0.s8 %v985
        %v987 = vlaneseq
        %v988 = vshrl.u32 %v987, 7
        %v989 = vsub.s32 %v986, %v988
        %v990 = vrot.slane %v982, %v989
        %v992 = vunpack.c.l.s4 1983009808
        %v993 = vunpack.c.0.s8 %v992
        %v994 = vlaneseq
        %v995 = vshrl.u32 %v994, 7
        %v996 = vsub.s32 %v993, %v995
        %v997 = vrot.slane %v983, %v996
        %v998 = vcombine.low %v990, %v997
        %v999 = vcombine.low %v745, %v749
        %v1000 = vcombine.low %v753, %v757
        %v1002 = vunpack.c.l.s4 1983009808
        %v1003 = vunpack.c.0.s8 %v1002
        %v1004 = vlaneseq
        %v1005 = vshrl.u32 %v1004, 7
        %v1006 = vsub.s32 %v1003, %v1005
        %v1007 = vrot.slane %v999, %v1006
        %v1009 = vunpack.c.l.s4 1983009808
        %v1010 = vunpack.c.0.s8 %v1009
        %v1011 = vlaneseq
        %v1012 = vshrl.u32 %v1011, 7
        %v1013 = vsub.s32 %v1010, %v1012
        %v1014 = vrot.slane %v1000, %v1013
        %v1015 = vcombine.low %v1007, %v1014
        %v1016 = vcombine.low %v761, %v765
        %v1017 = vcombine.low %v769, %v773
        %v1019 = vunpack.c.l.s4 1983009808
        %v1020 = vunpack.c.0.s8 %v1019
        %v1021 = vlaneseq
        %v1022 = vshrl.u32 %v1021, 7
        %v1023 = vsub.s32 %v1020, %v1022
        %v1024 = vrot.slane %v1016, %v1023
        %v1026 = vunpack.c.l.s4 1983009808
        %v1027 = vunpack.c.0.s8 %v1026
        %v1028 = vlaneseq
        %v1029 = vshrl.u32 %v1028, 7
        %v1030 = vsub.s32 %v1027, %v1029
        %v1031 = vrot.slane %v1017, %v1030
        %v1032 = vcombine.low %v1024, %v1031
        %v1033 = vcombine.low %v777, %v781
        %v1034 = vcombine.low %v785, %v789
        %v1036 = vunpack.c.l.s4 1983009808
        %v1037 = vunpack.c.0.s8 %v1036
        %v1038 = vlaneseq
        %v1039 = vshrl.u32 %v1038, 7
        %v1040 = vsub.s32 %v1037, %v1039
        %v1041 = vrot.slane %v1033, %v1040
        %v1043 = vunpack.c.l.s4 1983009808
        %v1044 = vunpack.c.0.s8 %v1043
        %v1045 = vlaneseq
        %v1046 = vshrl.u32 %v1045, 7
        %v1047 = vsub.s32 %v1044, %v1046
        %v1048 = vrot.slane %v1034, %v1047
        %v1049 = vcombine.low %v1041, %v1048
        %v1050 = vcombine.low %v793, %v797
        %v1051 = vcombine.low %v801, %v805
        %v1053 = vunpack.c.l.s4 1983009808
        %v1054 = vunpack.c.0.s8 %v1053
        %v1055 = vlaneseq
        %v1056 = vshrl.u32 %v1055, 7
        %v1057 = vsub.s32 %v1054, %v1056
        %v1058 = vrot.slane %v1050, %v1057
        %v1060 = vunpack.c.l.s4 1983009808
        %v1061 = vunpack.c.0.s8 %v1060
        %v1062 = vlaneseq
        %v1063 = vshrl.u32 %v1062, 7
        %v1064 = vsub.s32 %v1061, %v1063
        %v1065 = vrot.slane %v1051, %v1064
        %v1066 = vcombine.low %v1058, %v1065
        %v1067 = vcombine.low %v809, %v813
        %v1068 = vcombine.low %v817, %v821
        %v1070 = vunpack.c.l.s4 1983009808
        %v1071 = vunpack.c.0.s8 %v1070
        %v1072 = vlaneseq
        %v1073 = vshrl.u32 %v1072, 7
        %v1074 = vsub.s32 %v1071, %v1073
        %v1075 = vrot.slane %v1067, %v1074
        %v1077 = vunpack.c.l.s4 1983009808
        %v1078 = vunpack.c.0.s8 %v1077
        %v1079 = vlaneseq
        %v1080 = vshrl.u32 %v1079, 7
        %v1081 = vsub.s32 %v1078, %v1080
        %v1082 = vrot.slane %v1068, %v1081
        %v1083 = vcombine.low %v1075, %v1082
        %v1084 = vcombine.low %v825, %v829
        %v1085 = vcombine.low %v833, %v837
        %v1087 = vunpack.c.l.s4 1983009808
        %v1088 = vunpack.c.0.s8 %v1087
        %v1089 = vlaneseq
        %v1090 = vshrl.u32 %v1089, 7
        %v1091 = vsub.s32 %v1088, %v1090
        %v1092 = vrot.slane %v1084, %v1091
        %v1094 = vunpack.c.l.s4 1983009808
        %v1095 = vunpack.c.0.s8 %v1094
        %v1096 = vlaneseq
        %v1097 = vshrl.u32 %v1096, 7
        %v1098 = vsub.s32 %v1095, %v1097
        %v1099 = vrot.slane %v1085, %v1098
        %v1100 = vcombine.low %v1092, %v1099
        %v1101 = vcombine.low %v841, %v845
        %v1102 = vcombine.low %v849, %v853
        %v1104 = vunpack.c.l.s4 1983009808
        %v1105 = vunpack.c.0.s8 %v1104
        %v1106 = vlaneseq
        %v1107 = vshrl.u32 %v1106, 7
        %v1108 = vsub.s32 %v1105, %v1107
        %v1109 = vrot.slane %v1101, %v1108
        %v1111 = vunpack.c.l.s4 1983009808
        %v1112 = vunpack.c.0.s8 %v1111
        %v1113 = vlaneseq
        %v1114 = vshrl.u32 %v1113, 7
        %v1115 = vsub.s32 %v1112, %v1114
        %v1116 = vrot.slane %v1102, %v1115
        %v1117 = vcombine.low %v1109, %v1116
        %v1118 = vcombine.low %v857, %v861
        %v1119 = vcombine.low %v865, %v869
        %v1121 = vunpack.c.l.s4 1983009808
        %v1122 = vunpack.c.0.s8 %v1121
        %v1123 = vlaneseq
        %v1124 = vshrl.u32 %v1123, 7
        %v1125 = vsub.s32 %v1122, %v1124
        %v1126 = vrot.slane %v1118, %v1125
        %v1128 = vunpack.c.l.s4 1983009808
        %v1129 = vunpack.c.0.s8 %v1128
        %v1130 = vlaneseq
        %v1131 = vshrl.u32 %v1130, 7
        %v1132 = vsub.s32 %v1129, %v1131
        %v1133 = vrot.slane %v1119, %v1132
        %v1134 = vcombine.low %v1126, %v1133
        %v1135 = vcombine.low %v873, %v877
        %v1136 = vcombine.low %v881, %v885
        %v1138 = vunpack.c.l.s4 1983009808
        %v1139 = vunpack.c.0.s8 %v1138
        %v1140 = vlaneseq
        %v1141 = vshrl.u32 %v1140, 7
        %v1142 = vsub.s32 %v1139, %v1141
        %v1143 = vrot.slane %v1135, %v1142
        %v1145 = vunpack.c.l.s4 1983009808
        %v1146 = vunpack.c.0.s8 %v1145
        %v1147 = vlaneseq
        %v1148 = vshrl.u32 %v1147, 7
        %v1149 = vsub.s32 %v1146, %v1148
        %v1150 = vrot.slane %v1136, %v1149
        %v1151 = vcombine.low %v1143, %v1150
        %v1152 = vcombine.low %v889, %v893
        %v1153 = vcombine.low %v897, %v901
        %v1155 = vunpack.c.l.s4 1983009808
        %v1156 = vunpack.c.0.s8 %v1155
        %v1157 = vlaneseq
        %v1158 = vshrl.u32 %v1157, 7
        %v1159 = vsub.s32 %v1156, %v1158
        %v1160 = vrot.slane %v1152, %v1159
        %v1162 = vunpack.c.l.s4 1983009808
        %v1163 = vunpack.c.0.s8 %v1162
        %v1164 = vlaneseq
        %v1165 = vshrl.u32 %v1164, 7
        %v1166 = vsub.s32 %v1163, %v1165
        %v1167 = vrot.slane %v1153, %v1166
        %v1168 = vcombine.low %v1160, %v1167
        %v1169 = vcombine.low %v905, %v909
        %v1170 = vcombine.low %v913, %v917
        %v1172 = vunpack.c.l.s4 1983009808
        %v1173 = vunpack.c.0.s8 %v1172
        %v1174 = vlaneseq
        %v1175 = vshrl.u32 %v1174, 7
        %v1176 = vsub.s32 %v1173, %v1175
        %v1177 = vrot.slane %v1169, %v1176
        %v1179 = vunpack.c.l.s4 1983009808
        %v1180 = vunpack.c.0.s8 %v1179
        %v1181 = vlaneseq
        %v1182 = vshrl.u32 %v1181, 7
        %v1183 = vsub.s32 %v1180, %v1182
        %v1184 = vrot.slane %v1170, %v1183
        %v1185 = vcombine.low %v1177, %v1184
        %v1186 = vcombine.low %v921, %v925
        %v1187 = vcombine.low %v929, %v933
        %v1189 = vunpack.c.l.s4 1983009808
        %v1190 = vunpack.c.0.s8 %v1189
        %v1191 = vlaneseq
        %v1192 = vshrl.u32 %v1191, 7
        %v1193 = vsub.s32 %v1190, %v1192
        %v1194 = vrot.slane %v1186, %v1193
        %v1196 = vunpack.c.l.s4 1983009808
        %v1197 = vunpack.c.0.s8 %v1196
        %v1198 = vlaneseq
        %v1199 = vshrl.u32 %v1198, 7
        %v1200 = vsub.s32 %v1197, %v1199
        %v1201 = vrot.slane %v1187, %v1200
        %v1202 = vcombine.low %v1194, %v1201
        %v1203 = vcombine.low %v937, %v941
        %v1204 = vcombine.low %v945, %v949
        %v1206 = vunpack.c.l.s4 1983009808
        %v1207 = vunpack.c.0.s8 %v1206
        %v1208 = vlaneseq
        %v1209 = vshrl.u32 %v1208, 7
        %v1210 = vsub.s32 %v1207, %v1209
        %v1211 = vrot.slane %v1203, %v1210
        %v1213 = vunpack.c.l.s4 1983009808
        %v1214 = vunpack.c.0.s8 %v1213
        %v1215 = vlaneseq
        %v1216 = vshrl.u32 %v1215, 7
        %v1217 = vsub.s32 %v1214, %v1216
        %v1218 = vrot.slane %v1204, %v1217
        %v1219 = vcombine.low %v1211, %v1218
        %v1220 = vcombine.low %v953, %v957
        %v1221 = vcombine.low %v961, %v965
        %v1223 = vunpack.c.l.s4 1983009808
        %v1224 = vunpack.c.0.s8 %v1223
        %v1225 = vlaneseq
        %v1226 = vshrl.u32 %v1225, 7
        %v1227 = vsub.s32 %v1224, %v1226
        %v1228 = vrot.slane %v1220, %v1227
        %v1230 = vunpack.c.l.s4 1983009808
        %v1231 = vunpack.c.0.s8 %v1230
        %v1232 = vlaneseq
        %v1233 = vshrl.u32 %v1232, 7
        %v1234 = vsub.s32 %v1231, %v1233
        %v1235 = vrot.slane %v1221, %v1234
        %v1236 = vcombine.low %v1228, %v1235
        %v1237 = vcombine.low %v969, %v973
        %v1238 = vcombine.low %v977, %v981
        %v1240 = vunpack.c.l.s4 1983009808
        %v1241 = vunpack.c.0.s8 %v1240
        %v1242 = vlaneseq
        %v1243 = vshrl.u32 %v1242, 7
        %v1244 = vsub.s32 %v1241, %v1243
        %v1245 = vrot.slane %v1237, %v1244
        %v1247 = vunpack.c.l.s4 1983009808
        %v1248 = vunpack.c.0.s8 %v1247
        %v1249 = vlaneseq
        %v1250 = vshrl.u32 %v1249, 7
        %v1251 = vsub.s32 %v1248, %v1250
        %v1252 = vrot.slane %v1238, %v1251
        %v1253 = vcombine.low %v1245, %v1252
        %vm1270 = vcmask 130048
        %1271 = vst.msk [vmem:[%s163] sm:$0xff] %vm1270, %v998
        %1272 = vst.msk [vmem:[%s163 + $0x8] sm:$0xff] %vm1270, %v1015
        %1273 = vst.msk [vmem:[%s163 + $0x10] sm:$0xff] %vm1270, %v998
        %1274 = vst.msk [vmem:[%s163 + $0x18] sm:$0xff] %vm1270, %v1015
        %1275 = vst.msk [vmem:[%s163 + $0x20] sm:$0xff] %vm1270, %v1032
        %1276 = vst.msk [vmem:[%s163 + $0x28] sm:$0xff] %vm1270, %v1049
        %1277 = vst.msk [vmem:[%s163 + $0x30] sm:$0xff] %vm1270, %v1032
        %1278 = vst.msk [vmem:[%s163 + $0x38] sm:$0xff] %vm1270, %v1049
        %1279 = vst.msk [vmem:[%s163 + $0x40] sm:$0xff] %vm1270, %v1066
        %1280 = vst.msk [vmem:[%s163 + $0x48] sm:$0xff] %vm1270, %v1083
        %1281 = vst.msk [vmem:[%s163 + $0x50] sm:$0xff] %vm1270, %v1066
        %1282 = vst.msk [vmem:[%s163 + $0x58] sm:$0xff] %vm1270, %v1083
        %1283 = vst.msk [vmem:[%s163 + $0x60] sm:$0xff] %vm1270, %v1100
        %1284 = vst.msk [vmem:[%s163 + $0x68] sm:$0xff] %vm1270, %v1117
        %1285 = vst.msk [vmem:[%s163 + $0x70] sm:$0xff] %vm1270, %v1100
        %1286 = vst.msk [vmem:[%s163 + $0x78] sm:$0xff] %vm1270, %v1117
        %1287 = vst.msk [vmem:[%s163 + $0x80] sm:$0xff] %vm1270, %v1134
        %1288 = vst.msk [vmem:[%s163 + $0x88] sm:$0xff] %vm1270, %v1151
        %1289 = vst.msk [vmem:[%s163 + $0x90] sm:$0xff] %vm1270, %v1134
        %1290 = vst.msk [vmem:[%s163 + $0x98] sm:$0xff] %vm1270, %v1151
        %1291 = vst.msk [vmem:[%s163 + $0xa0] sm:$0xff] %vm1270, %v1168
        %1292 = vst.msk [vmem:[%s163 + $0xa8] sm:$0xff] %vm1270, %v1185
        %1293 = vst.msk [vmem:[%s163 + $0xb0] sm:$0xff] %vm1270, %v1168
        %1294 = vst.msk [vmem:[%s163 + $0xb8] sm:$0xff] %vm1270, %v1185
        %1295 = vst.msk [vmem:[%s163 + $0xc0] sm:$0xff] %vm1270, %v1202
        %1296 = vst.msk [vmem:[%s163 + $0xc8] sm:$0xff] %vm1270, %v1219
        %1297 = vst.msk [vmem:[%s163 + $0xd0] sm:$0xff] %vm1270, %v1202
        %1298 = vst.msk [vmem:[%s163 + $0xd8] sm:$0xff] %vm1270, %v1219
        %1299 = vst.msk [vmem:[%s163 + $0xe0] sm:$0xff] %vm1270, %v1236
        %1300 = vst.msk [vmem:[%s163 + $0xe8] sm:$0xff] %vm1270, %v1253
        %1301 = vst.msk [vmem:[%s163 + $0xf0] sm:$0xff] %vm1270, %v1236
        %1302 = vst.msk [vmem:[%s163 + $0xf8] sm:$0xff] %vm1270, %v1253
        %s1303 = sand.u32 %s93, 1
        %s1304 = scalar_lea.sflag [#allocation3], %s1303
        %s1305 = sand.u32 %s93, 1
        %s1306 = smul.addr %s1305, 256
        %s1307 = scalar_lea.vmem [#allocation2], %s1306
        // Predicated region
        $region33: #{tpu_custom_call.1} parent=31 // pred_check
          %p1308 = pneg %p103
        $region34: #{tpu_custom_call.1} parent=31 // pred_check_branch
          %1310 = sbr.rel (%p1308) target = $region36
        $region35: #{tpu_custom_call.1} parent=31 // pred_region
          %s1312 = ssub.s32 4096, 4096
          %1313 = vsyncadd %s1304, %s1312
          %s1314 = smul.addr %s17, 32
          %s1315 = smul.addr %s1314, 128
          %s1316 = scalar_lea.hbm %s3, %s1315
          %s1317 = sshll.u32 %s1307, 4
          %s1318 = int_to_ptr.vmem [resolvable:$true] %s1317
          %1323 = dma.vmem_to_hbm [thread:$0]  %s1318, 4096, %s1316, %s1304, 128, 128, 8
        $region36: #{tpu_custom_call.1} parent=31 // pred_fallthru
          _
      $region32: #{tpu_custom_call.1} parent=5 // pred_fallthru
        _
      %p1324 = scmp.le.s32.totalorder 2, %s12
      // Predicated region
      $region37: #{tpu_custom_call.1} parent=5 // pred_check
        %p1325 = pneg %p1324
      $region38: #{tpu_custom_call.1} parent=5 // pred_check_branch
        %1327 = sbr.rel (%p1325) target = $region40
      $region39: #{tpu_custom_call.1} parent=5 // pred_region
        %s1328 = ssub.s32 %s12, 2
        // Predicated region
        $region41: #{tpu_custom_call.1} parent=39 // pred_check
          %p1329 = pneg %p109
        $region42: #{tpu_custom_call.1} parent=39 // pred_check_branch
          %1331 = sbr.rel (%p1329) target = $region44
        $region43: #{tpu_custom_call.1} parent=39 // pred_region
          %s1332 = sand.u32 %s94, 1
          %s1333 = scalar_lea.sflag [#allocation3], %s1332
          %s1334 = sand.u32 %s94, 1
          %s1335 = smul.addr %s1334, 256
          %s1336 = scalar_lea.vmem [#allocation2], %s1335
          %1337 = dma.done %s1333, 4096
        $region44: #{tpu_custom_call.1} parent=39 // pred_fallthru
          _
      $region40: #{tpu_custom_call.1} parent=5 // pred_fallthru
        _
    $region6: #{tpu_custom_call.1} parent=1 // loop_footer
      %s16 = sadd.s32 1, %s12
    $region7: #{tpu_custom_call.1} parent=1 // loop_footer_branch
      %11 = sbr.rel target = $region3
    $region8: #{tpu_custom_call.1} parent=1 // loop_exit
      _
    %1338 = vsyncpa [#allocation3], 1
    %s1339 = scalar_lea.sflag [#allocation3], 1
    %1340 = vsyncpa %s1339, 1

</llo_original>
